<compile_context>
chip_gen: v7x
topology: tpu7x:2x2x1
jax: 0.10.0
libtpu: 0.0.40
codegen_flags: <defaults>
</compile_context>

<pallas_src>
import functools

import jax
import jax.numpy as jnp
from jax.experimental import pallas as pl
from jax.experimental.pallas import tpu as pltpu


# ---------------------------------------------------------------------------
# Model hyper-parameters (consistent with the module's __init__)
# ---------------------------------------------------------------------------
BATCH = 2
LATENT_DIM = 32
UNITS = (32, 64)          # two hidden Linear+Tanh(+Dropout) layers
BOND_DIM = 4
N_ATOMS = 8
ATOM_DIM = 4
DROPOUT = 0.0             # TODO(synk): dropout is identity in eval mode; not applied in-kernel.

ADJ_COLS = BOND_DIM * N_ATOMS * N_ATOMS     # 256 (lane-dense, 2 full vregs)
FEAT_COLS = N_ATOMS * ATOM_DIM              # 32
HEAD_COLS = ADJ_COLS + FEAT_COLS            # 288


def _round_up(x, m):
    return ((x + m - 1) // m) * m


# ---------------------------------------------------------------------------
# Kernel
# ---------------------------------------------------------------------------
def _graph_gen_kernel(
    x_ref, w1_ref, b1_ref, w2_ref, b2_ref, wh_ref, bh_ref,
    adj_ref, feat_ref,
    *, bond_dim, n_atoms, atom_dim,
):
    # --- input_sequential: (Linear -> Tanh -> Dropout[identity]) x 2 ---------
    x = x_ref[...].astype(jnp.bfloat16)
    h = jnp.tanh(
        jnp.dot(x, w1_ref[...], preferred_element_type=jnp.float32) + b1_ref[...]
    )
    z = jnp.tanh(
        jnp.dot(h.astype(jnp.bfloat16), w2_ref[...],
                preferred_element_type=jnp.float32) + b2_ref[...]
    )

    # --- fused adjacency + feature head: single bf16 MXU matmul --------------
    heads = jnp.dot(z.astype(jnp.bfloat16), wh_ref[...],
                    preferred_element_type=jnp.float32) + bh_ref[...]

    adj_cols = bond_dim * n_atoms * n_atoms
    bm = heads.shape[0]

    # Adjacency logits are already symmetric (folded into the weights).
    # Softmax over bond_dim == reduction over the (bond) groups of the flat cols.
    adj = heads[:, :adj_cols].reshape(bm, bond_dim, n_atoms * n_atoms)
    adj_max = jnp.max(adj, axis=1, keepdims=True)
    adj_exp = jnp.exp(adj - adj_max)
    adj_den = jnp.sum(adj_exp, axis=1, keepdims=True)
    adj_p = adj_exp * pl.reciprocal(adj_den, approx=True)
    adj_ref[...] = adj_p.reshape(bm, adj_cols)          # lane-dense (bm, 256) store

    # Feature softmax over atom_dim (innermost groups of the flat cols).
    feat = heads[:, adj_cols:].reshape(bm, n_atoms, atom_dim)
    feat_max = jnp.max(feat, axis=2, keepdims=True)
    feat_exp = jnp.exp(feat - feat_max)
    feat_den = jnp.sum(feat_exp, axis=2, keepdims=True)
    feat_p = feat_exp * pl.reciprocal(feat_den, approx=True)
    feat_ref[...] = feat_p.reshape(bm, n_atoms * atom_dim)   # flat (bm, 32) store


# ---------------------------------------------------------------------------
# Parameter preparation (offline, once): fold symmetrization, fuse heads, bf16
# ---------------------------------------------------------------------------
def prepare_params(raw_params):
    w1, b1, w2, b2, wadj, badj, wfeat, bfeat = raw_params

    # Flat-column permutation (e, i, j) -> (e, j, i).
    perm = jnp.swapaxes(
        jnp.arange(ADJ_COLS).reshape(BOND_DIM, N_ATOMS, N_ATOMS), -1, -2
    ).reshape(-1)
    wadj_sym = 0.5 * (wadj + wadj[:, perm])      # 0.5 factor folded in
    badj_sym = 0.5 * (badj + badj[:, perm])

    w_heads = jnp.concatenate([wadj_sym, wfeat], axis=1)     # (u2, 288)
    b_heads = jnp.concatenate([badj_sym, bfeat], axis=1)     # (1, 288)

    return (
        w1.astype(jnp.bfloat16), b1.astype(jnp.float32),
        w2.astype(jnp.bfloat16), b2.astype(jnp.float32),
        w_heads.astype(jnp.bfloat16), b_heads.astype(jnp.float32),
    )


# ---------------------------------------------------------------------------
# Wrapper
# ---------------------------------------------------------------------------
@functools.partial(jax.jit, static_argnames=("block_rows",))
def graph_generator_forward(x, kernel_params, *, block_rows=128):
    """Full GraphGenerator forward in one Pallas kernel, grid over batch rows."""
    w1, b1, w2, b2, wh, bh = kernel_params
    batch, latent = x.shape

    # Batch tile: multiple of 8 sublanes; large batches tile at `block_rows`
    # so the "parallel" grid axis splits across TensorCores (v7x megacore).
    bm = block_rows if batch >= block_rows else _round_up(batch, 8)
    padded = _round_up(batch, bm)
    if padded != batch:
        x = jnp.pad(x, ((0, padded - batch), (0, 0)))
    grid = (padded // bm,)

    kernel = functools.partial(
        _graph_gen_kernel,
        bond_dim=BOND_DIM, n_atoms=N_ATOMS, atom_dim=ATOM_DIM,
    )

    def full_spec(arr):
        return pl.BlockSpec(arr.shape, lambda i: (0,) * arr.ndim)

    adj_flat, feat_flat = pl.pallas_call(
        kernel,
        out_shape=(
            jax.ShapeDtypeStruct((padded, ADJ_COLS), jnp.float32),
            jax.ShapeDtypeStruct((padded, FEAT_COLS), jnp.float32),
        ),
        grid=grid,
        in_specs=[
            pl.BlockSpec((bm, latent), lambda i: (i, 0)),
            full_spec(w1), full_spec(b1),
            full_spec(w2), full_spec(b2),
            full_spec(wh), full_spec(bh),
        ],
        out_specs=(
            pl.BlockSpec((bm, ADJ_COLS), lambda i: (i, 0)),
            pl.BlockSpec((bm, FEAT_COLS), lambda i: (i, 0)),
        ),
        compiler_params=pltpu.CompilerParams(
            dimension_semantics=("parallel",),
        ),
    )(x, w1, b1, w2, b2, wh, bh)

    # Free row-major reshapes / un-padding in the wrapper.
    adj = adj_flat[:batch].reshape(batch, BOND_DIM, N_ATOMS, N_ATOMS)
    feat = feat_flat[:batch].reshape(batch, N_ATOMS, ATOM_DIM)
    return [adj, feat]


# ---------------------------------------------------------------------------
# Synthetic parameters + pure-JAX reference (faithful to the PyTorch module)
# ---------------------------------------------------------------------------
def init_params(key):
    """Weights stored as (in, out) so the kernel does x @ W + b directly."""
    ks = jax.random.split(key, 8)
    u1, u2 = UNITS

    def w(k, fan_in, fan_out):
        return jax.random.normal(k, (fan_in, fan_out), jnp.float32) * 0.1

    def b(k, fan_out):
        return jax.random.normal(k, (1, fan_out), jnp.float32) * 0.01

    return (
        w(ks[0], LATENT_DIM, u1), b(ks[1], u1),
        w(ks[2], u1, u2),         b(ks[3], u2),
        w(ks[4], u2, ADJ_COLS),   b(ks[5], ADJ_COLS),
        w(ks[6], u2, FEAT_COLS),  b(ks[7], FEAT_COLS),
    )


def reference_forward(x, raw_params):
    """Pure-JAX f32 reference mirroring the PyTorch forward in eval mode."""
    w1, b1, w2, b2, wadj, badj, wfeat, bfeat = raw_params
    h = jnp.tanh(x @ w1 + b1)
    z = jnp.tanh(h @ w2 + b2)
    adj = (z @ wadj + badj).reshape(x.shape[0], BOND_DIM, N_ATOMS, N_ATOMS)
    adj = 0.5 * (adj + jnp.swapaxes(adj, -1, -2))
    adj = jax.nn.softmax(adj, axis=1)
    feat = (z @ wfeat + bfeat).reshape(x.shape[0], N_ATOMS, ATOM_DIM)
    feat = jax.nn.softmax(feat, axis=2)
    return [adj, feat]


if __name__ == "__main__":
    key = jax.random.PRNGKey(0)
    k_x, k_p, k_big = jax.random.split(key, 3)

    raw_params = init_params(k_p)
    kernel_params = prepare_params(raw_params)

    # Small shape consistent with the module (batch=2, latent=32).
    x = jax.random.normal(k_x, (BATCH, LATENT_DIM), jnp.float32)
    adj, feat = graph_generator_forward(x, kernel_params)
    adj = jax.block_until_ready(adj)
    feat = jax.block_until_ready(feat)

    adj_ref, feat_ref = reference_forward(x, raw_params)
    assert adj.shape == (BATCH, BOND_DIM, N_ATOMS, N_ATOMS)
    assert feat.shape == (BATCH, N_ATOMS, ATOM_DIM)
    # bf16 weights + approximate reciprocal => compare vs the exact f32
    # reference at a loose-but-meaningful tolerance.
    assert jnp.allclose(adj, adj_ref, atol=3e-2, rtol=3e-2)
    assert jnp.allclose(feat, feat_ref, atol=3e-2, rtol=3e-2)
    # Structural checks (tight): adjacency is exactly symmetric because the
    # symmetrization is folded into shared weight columns; softmaxes sum to 1.
    assert jnp.allclose(adj, jnp.swapaxes(adj, -1, -2), atol=1e-6)
    assert jnp.allclose(jnp.sum(adj, axis=1), 1.0, atol=1e-2)
    assert jnp.allclose(jnp.sum(feat, axis=2), 1.0, atol=1e-2)

    # Larger batch exercises the multi-step "parallel" grid path (overhead
    # amortization across TensorCores).
    xb = jax.random.normal(k_big, (256, LATENT_DIM), jnp.float32)
    adj_b, feat_b = graph_generator_forward(xb, kernel_params)
    adj_b = jax.block_until_ready(adj_b)
    feat_b = jax.block_until_ready(feat_b)
    adj_b_ref, feat_b_ref = reference_forward(xb, raw_params)
    assert jnp.allclose(adj_b, adj_b_ref, atol=3e-2, rtol=3e-2)
    assert jnp.allclose(feat_b, feat_b_ref, atol=3e-2, rtol=3e-2)

    print("KERNEL_OK")
</pallas_src>

<mosaic_0001>
module attributes {stable_mosaic.version = 11 : i64} {
  func.func @_graph_gen_kernel(%arg0: i32, %arg1: memref<8x32xf32, #tpu.memory_space<vmem>>, %arg2: memref<32x32xbf16, #tpu.memory_space<vmem>>, %arg3: memref<1x32xf32, #tpu.memory_space<vmem>>, %arg4: memref<32x64xbf16, #tpu.memory_space<vmem>>, %arg5: memref<1x64xf32, #tpu.memory_space<vmem>>, %arg6: memref<64x288xbf16, #tpu.memory_space<vmem>>, %arg7: memref<1x288xf32, #tpu.memory_space<vmem>>, %arg8: memref<8x256xf32, #tpu.memory_space<vmem>>, %arg9: memref<8x32xf32, #tpu.memory_space<vmem>>) attributes {dimension_semantics = [#tpu.dimension_semantics<parallel>], iteration_bounds = array<i64: 1>, scalar_prefetch = 0 : i64, scratch_operands = 0 : i64, tpu.core_type = #tpu.core_type<tc>, window_params = [{transform_indices = @transform_0, window_bounds = array<i64: 8, 32>}, {pipeline_mode = #tpu.pipeline_mode<synchronous>, transform_indices = @transform_1, window_bounds = array<i64: 32, 32>}, {pipeline_mode = #tpu.pipeline_mode<synchronous>, transform_indices = @transform_2, window_bounds = array<i64: 1, 32>}, {pipeline_mode = #tpu.pipeline_mode<synchronous>, transform_indices = @transform_3, window_bounds = array<i64: 32, 64>}, {pipeline_mode = #tpu.pipeline_mode<synchronous>, transform_indices = @transform_4, window_bounds = array<i64: 1, 64>}, {pipeline_mode = #tpu.pipeline_mode<synchronous>, transform_indices = @transform_5, window_bounds = array<i64: 64, 288>}, {pipeline_mode = #tpu.pipeline_mode<synchronous>, transform_indices = @transform_6, window_bounds = array<i64: 1, 288>}, {transform_indices = @transform_7, window_bounds = array<i64: 8, 256>}, {transform_indices = @transform_8, window_bounds = array<i64: 8, 32>}]} {
    %c0 = arith.constant 0 : index
    %c0_0 = arith.constant 0 : index
    %0 = vector.load %arg1[%c0, %c0_0] : memref<8x32xf32, #tpu.memory_space<vmem>>, vector<8x32xf32>
    %1 = arith.truncf %0 : vector<8x32xf32> to vector<8x32xbf16>
    %c0_1 = arith.constant 0 : index
    %c0_2 = arith.constant 0 : index
    %2 = vector.load %arg2[%c0_1, %c0_2] : memref<32x32xbf16, #tpu.memory_space<vmem>>, vector<32x32xbf16>
    %cst = arith.constant dense<0.000000e+00> : vector<8x32xf32>
    %3 = tpu.matmul %1, %2, %cst {dimension_numbers = #tpu.dot_dimension_numbers<[1], [0], [0], [1], [0, 0, 1, 1], [], []>} : vector<8x32xbf16>, vector<32x32xbf16>, vector<8x32xf32> -> vector<8x32xf32>
    %c0_3 = arith.constant 0 : index
    %c0_4 = arith.constant 0 : index
    %4 = vector.load %arg3[%c0_3, %c0_4] : memref<1x32xf32, #tpu.memory_space<vmem>>, vector<1x32xf32>
    %5 = vector.broadcast %4 : vector<1x32xf32> to vector<8x32xf32>
    %6 = arith.addf %3, %5 : vector<8x32xf32>
    %7 = math.tanh %6 : vector<8x32xf32>
    %8 = arith.truncf %7 : vector<8x32xf32> to vector<8x32xbf16>
    %c0_5 = arith.constant 0 : index
    %c0_6 = arith.constant 0 : index
    %9 = vector.load %arg4[%c0_5, %c0_6] : memref<32x64xbf16, #tpu.memory_space<vmem>>, vector<32x64xbf16>
    %cst_7 = arith.constant dense<0.000000e+00> : vector<8x64xf32>
    %10 = tpu.matmul %8, %9, %cst_7 {dimension_numbers = #tpu.dot_dimension_numbers<[1], [0], [0], [1], [0, 0, 1, 1], [], []>} : vector<8x32xbf16>, vector<32x64xbf16>, vector<8x64xf32> -> vector<8x64xf32>
    %c0_8 = arith.constant 0 : index
    %c0_9 = arith.constant 0 : index
    %11 = vector.load %arg5[%c0_8, %c0_9] : memref<1x64xf32, #tpu.memory_space<vmem>>, vector<1x64xf32>
    %12 = vector.broadcast %11 : vector<1x64xf32> to vector<8x64xf32>
    %13 = arith.addf %10, %12 : vector<8x64xf32>
    %14 = math.tanh %13 : vector<8x64xf32>
    %15 = arith.truncf %14 : vector<8x64xf32> to vector<8x64xbf16>
    %c0_10 = arith.constant 0 : index
    %c0_11 = arith.constant 0 : index
    %16 = vector.load %arg6[%c0_10, %c0_11] : memref<64x288xbf16, #tpu.memory_space<vmem>>, vector<64x288xbf16>
    %cst_12 = arith.constant dense<0.000000e+00> : vector<8x288xf32>
    %17 = tpu.matmul %15, %16, %cst_12 {dimension_numbers = #tpu.dot_dimension_numbers<[1], [0], [0], [1], [0, 0, 1, 1], [], []>} : vector<8x64xbf16>, vector<64x288xbf16>, vector<8x288xf32> -> vector<8x288xf32>
    %c0_13 = arith.constant 0 : index
    %c0_14 = arith.constant 0 : index
    %18 = vector.load %arg7[%c0_13, %c0_14] : memref<1x288xf32, #tpu.memory_space<vmem>>, vector<1x288xf32>
    %19 = vector.broadcast %18 : vector<1x288xf32> to vector<8x288xf32>
    %20 = arith.addf %17, %19 : vector<8x288xf32>
    %21 = vector.extract_strided_slice %20 {offsets = [0, 0], sizes = [8, 256], strides = [1, 1]} : vector<8x288xf32> to vector<8x256xf32>
    %22 = vector.shape_cast %21 : vector<8x256xf32> to vector<8x4x64xf32>
    %cst_15 = arith.constant dense<0xFF800000> : vector<8x64xf32>
    %23 = vector.multi_reduction <maximumf>, %22, %cst_15 [1] : vector<8x4x64xf32> to vector<8x64xf32>
    %24 = vector.shape_cast %23 : vector<8x64xf32> to vector<8x1x64xf32>
    %25 = vector.broadcast %24 : vector<8x1x64xf32> to vector<8x4x64xf32>
    %26 = arith.subf %22, %25 : vector<8x4x64xf32>
    %27 = math.exp %26 : vector<8x4x64xf32>
    %cst_16 = arith.constant dense<0.000000e+00> : vector<8x64xf32>
    %28 = vector.multi_reduction <add>, %27, %cst_16 [1] : vector<8x4x64xf32> to vector<8x64xf32>
    %29 = vector.shape_cast %28 : vector<8x64xf32> to vector<8x1x64xf32>
    %30 = tpu.reciprocal %29 {approx = true} : vector<8x1x64xf32> -> vector<8x1x64xf32>
    %31 = vector.broadcast %30 : vector<8x1x64xf32> to vector<8x4x64xf32>
    %32 = arith.mulf %27, %31 : vector<8x4x64xf32>
    %33 = vector.shape_cast %32 : vector<8x4x64xf32> to vector<8x256xf32>
    %c0_17 = arith.constant 0 : index
    %c0_18 = arith.constant 0 : index
    %34 = vector.load %arg8[%c0_17, %c0_18] : memref<8x256xf32, #tpu.memory_space<vmem>>, vector<8x256xf32>
    tpu.vector_store %arg8[%c0_17, %c0_18], %33 {strides = array<i32>} : memref<8x256xf32, #tpu.memory_space<vmem>>, vector<8x256xf32>,
    %35 = vector.extract_strided_slice %20 {offsets = [0, 256], sizes = [8, 32], strides = [1, 1]} : vector<8x288xf32> to vector<8x32xf32>
    %36 = vector.shape_cast %35 : vector<8x32xf32> to vector<8x8x4xf32>
    %cst_19 = arith.constant dense<0xFF800000> : vector<8x8xf32>
    %37 = vector.multi_reduction <maximumf>, %36, %cst_19 [2] : vector<8x8x4xf32> to vector<8x8xf32>
    %38 = vector.shape_cast %37 : vector<8x8xf32> to vector<8x8x1xf32>
    %39 = vector.broadcast %38 : vector<8x8x1xf32> to vector<8x8x4xf32>
    %40 = arith.subf %36, %39 : vector<8x8x4xf32>
    %41 = math.exp %40 : vector<8x8x4xf32>
    %cst_20 = arith.constant dense<0.000000e+00> : vector<8x8xf32>
    %42 = vector.multi_reduction <add>, %41, %cst_20 [2] : vector<8x8x4xf32> to vector<8x8xf32>
    %43 = vector.shape_cast %42 : vector<8x8xf32> to vector<8x8x1xf32>
    %44 = tpu.reciprocal %43 {approx = true} : vector<8x8x1xf32> -> vector<8x8x1xf32>
    %45 = vector.broadcast %44 : vector<8x8x1xf32> to vector<8x8x4xf32>
    %46 = arith.mulf %41, %45 : vector<8x8x4xf32>
    %47 = vector.shape_cast %46 : vector<8x8x4xf32> to vector<8x32xf32>
    %c0_21 = arith.constant 0 : index
    %c0_22 = arith.constant 0 : index
    %48 = vector.load %arg9[%c0_21, %c0_22] : memref<8x32xf32, #tpu.memory_space<vmem>>, vector<8x32xf32>
    tpu.vector_store %arg9[%c0_21, %c0_22], %47 {strides = array<i32>} : memref<8x32xf32, #tpu.memory_space<vmem>>, vector<8x32xf32>,
    return
  }
  func.func @transform_0(%arg0: i32) -> (i32, i32) {
    %c0_i32 = arith.constant 0 : i32
    %c0_i32_0 = arith.constant 0 : i32
    return %arg0, %c0_i32 : i32, i32
  }
  func.func @transform_1(%arg0: i32) -> (i32, i32) {
    %c0_i32 = arith.constant 0 : i32
    %c0_i32_0 = arith.constant 0 : i32
    %c0_i32_1 = arith.constant 0 : i32
    return %c0_i32, %c0_i32_0 : i32, i32
  }
  func.func @transform_2(%arg0: i32) -> (i32, i32) {
    %c0_i32 = arith.constant 0 : i32
    %c0_i32_0 = arith.constant 0 : i32
    %c0_i32_1 = arith.constant 0 : i32
    return %c0_i32, %c0_i32_0 : i32, i32
  }
  func.func @transform_3(%arg0: i32) -> (i32, i32) {
    %c0_i32 = arith.constant 0 : i32
    %c0_i32_0 = arith.constant 0 : i32
    %c0_i32_1 = arith.constant 0 : i32
    return %c0_i32, %c0_i32_0 : i32, i32
  }
  func.func @transform_4(%arg0: i32) -> (i32, i32) {
    %c0_i32 = arith.constant 0 : i32
    %c0_i32_0 = arith.constant 0 : i32
    %c0_i32_1 = arith.constant 0 : i32
    return %c0_i32, %c0_i32_0 : i32, i32
  }
  func.func @transform_5(%arg0: i32) -> (i32, i32) {
    %c0_i32 = arith.constant 0 : i32
    %c0_i32_0 = arith.constant 0 : i32
    %c0_i32_1 = arith.constant 0 : i32
    return %c0_i32, %c0_i32_0 : i32, i32
  }
  func.func @transform_6(%arg0: i32) -> (i32, i32) {
    %c0_i32 = arith.constant 0 : i32
    %c0_i32_0 = arith.constant 0 : i32
    %c0_i32_1 = arith.constant 0 : i32
    return %c0_i32, %c0_i32_0 : i32, i32
  }
  func.func @transform_7(%arg0: i32) -> (i32, i32) {
    %c0_i32 = arith.constant 0 : i32
    %c0_i32_0 = arith.constant 0 : i32
    return %arg0, %c0_i32 : i32, i32
  }
  func.func @transform_8(%arg0: i32) -> (i32, i32) {
    %c0_i32 = arith.constant 0 : i32
    %c0_i32_0 = arith.constant 0 : i32
    return %arg0, %c0_i32 : i32, i32
  }
}

</mosaic_0001>

<llo_original>
// kernel: graph_generator_forward.1
$region0: #{graph_generator_forward.1}
  #allocation0 [shape = 'u32[]', space=smem, size = 0x4, offset = 0x4, fixed_abs, tag = 'smem constant byte address 0x4 - core index']
  #allocation1 [shape = 'u32[144,128]{1,0:T(1,128)}', space=vmem, size = 0x12000, scoped, tag = 'internal scratch']
  %s0 = inlined_call_operand.vmem [shape: f32[8,32], index: 0, kind: input, shape index: {}]
  %s1 = inlined_call_operand.hbm [shape: bf16[32,32], index: 1, kind: input, shape index: {}]
  %s2 = inlined_call_operand.vmem [shape: f32[1,32], index: 2, kind: input, shape index: {}]
  %s3 = inlined_call_operand.vmem [shape: bf16[32,64], index: 3, kind: input, shape index: {}]
  %s4 = inlined_call_operand.vmem [shape: f32[1,64], index: 4, kind: input, shape index: {}]
  %s5 = inlined_call_operand.hbm [shape: bf16[64,288], index: 5, kind: input, shape index: {}]
  %s6 = inlined_call_operand.vmem [shape: f32[1,288], index: 6, kind: input, shape index: {}]
  %s7 = inlined_call_operand.vmem [shape: f32[8,256], index: 7, kind: output, shape index: {0}]
  %s8 = inlined_call_operand.vmem [shape: f32[8,32], index: 8, kind: output, shape index: {1}]
  %9 = xla_tuple %s7, %s8
  %s10 = sld [smem:[#allocation0]]
  $region54: #{graph_generator_forward.1} parent=0
    _
  %s12 = ssub.s32 1, %s10
  %s13 = scalar_select 0, %s12, %s10
  $region1: #{graph_generator_forward.1} parent=0
    #allocation2 [shape = 'u8[8192]{0}', space=vmem, size = 0x2000, scoped, tag = 'input window, operand 1, single buffered']
    #allocation3 [shape = 's32[1]{0}', space=sflag, size = 0x4, scoped, tag = 'scoped memory for graph_generator_forward.1']
    #allocation4 [shape = 'u8[49152]{0}', space=vmem, size = 0xc000, scoped, tag = 'input window, operand 5, single buffered']
    #allocation5 [shape = 's32[1]{0}', space=sflag, size = 0x4, scoped, tag = 'scoped memory for graph_generator_forward.1']
    %14 = vsyncpa [#allocation3], 0
    %15 = vsyncpa [#allocation5], 0
    // Predicated region
    $region2: #{graph_generator_forward.1} parent=1 // pred_check
      _
    $region3: #{graph_generator_forward.1} parent=1 // pred_check_branch
      %17 = sbr.rel (0) target = $region5
    $region4: #{graph_generator_forward.1} parent=1 // pred_region
      _
    $region5: #{graph_generator_forward.1} parent=1 // pred_fallthru
      _
    // Predicated region
    $region6: #{graph_generator_forward.1} parent=1 // pred_check
      _
    $region7: #{graph_generator_forward.1} parent=1 // pred_check_branch
      %19 = sbr.rel (0) target = $region9
    $region8: #{graph_generator_forward.1} parent=1 // pred_region
      %s21 = ssub.s32 256, 256
      %22 = vsyncadd [#allocation3], %s21
      %s23 = sshll.u32 [#allocation2], 4
      %s24 = int_to_ptr.vmem [resolvable:$true] %s23
      %29 = dma.hbm_to_vmem [thread:$0]  %s1, 256, %s24, [#allocation3], 64, 64, 4
    $region9: #{graph_generator_forward.1} parent=1 // pred_fallthru
      _
    // Predicated region
    $region10: #{graph_generator_forward.1} parent=1 // pred_check
      _
    $region11: #{graph_generator_forward.1} parent=1 // pred_check_branch
      %31 = sbr.rel (0) target = $region13
    $region12: #{graph_generator_forward.1} parent=1 // pred_region
      _
    $region13: #{graph_generator_forward.1} parent=1 // pred_fallthru
      _
    // Predicated region
    $region14: #{graph_generator_forward.1} parent=1 // pred_check
      _
    $region15: #{graph_generator_forward.1} parent=1 // pred_check_branch
      %33 = sbr.rel (0) target = $region17
    $region16: #{graph_generator_forward.1} parent=1 // pred_region
      _
    $region17: #{graph_generator_forward.1} parent=1 // pred_fallthru
      _
    // Predicated region
    $region18: #{graph_generator_forward.1} parent=1 // pred_check
      _
    $region19: #{graph_generator_forward.1} parent=1 // pred_check_branch
      %35 = sbr.rel (0) target = $region21
    $region20: #{graph_generator_forward.1} parent=1 // pred_region
      _
    $region21: #{graph_generator_forward.1} parent=1 // pred_fallthru
      _
    // Predicated region
    $region22: #{graph_generator_forward.1} parent=1 // pred_check
      _
    $region23: #{graph_generator_forward.1} parent=1 // pred_check_branch
      %37 = sbr.rel (0) target = $region25
    $region24: #{graph_generator_forward.1} parent=1 // pred_region
      %s39 = ssub.s32 1536, 1536
      %40 = vsyncadd [#allocation5], %s39
      %s41 = sshll.u32 [#allocation4], 4
      %s42 = int_to_ptr.vmem [resolvable:$true] %s41
      %47 = dma.hbm_to_vmem [thread:$0]  %s5, 1536, %s42, [#allocation5], 192, 192, 12
    $region25: #{graph_generator_forward.1} parent=1 // pred_fallthru
      _
    // Predicated region
    $region26: #{graph_generator_forward.1} parent=1 // pred_check
      _
    $region27: #{graph_generator_forward.1} parent=1 // pred_check_branch
      %49 = sbr.rel (0) target = $region29
    $region28: #{graph_generator_forward.1} parent=1 // pred_region
      _
    $region29: #{graph_generator_forward.1} parent=1 // pred_fallthru
      _
    // Predicated region
    $region30: #{graph_generator_forward.1} parent=1 // pred_check
      _
    $region31: #{graph_generator_forward.1} parent=1 // pred_check_branch
      %51 = sbr.rel (0) target = $region33
    $region32: #{graph_generator_forward.1} parent=1 // pred_region
      %52 = dma.done [#allocation3], 256
    $region33: #{graph_generator_forward.1} parent=1 // pred_fallthru
      _
    // Predicated region
    $region34: #{graph_generator_forward.1} parent=1 // pred_check
      _
    $region35: #{graph_generator_forward.1} parent=1 // pred_check_branch
      %54 = sbr.rel (0) target = $region37
    $region36: #{graph_generator_forward.1} parent=1 // pred_region
      %55 = dma.done [#allocation5], 1536
    $region37: #{graph_generator_forward.1} parent=1 // pred_fallthru
      _
    %v57 = vld [vmem:[%s0] sm:$0xff]
    %v58 = vpack.c.bf16 %v57, %v57
    %v59 = vld [vmem:[#allocation2] sm:$0xf]
    %v60 = vld [vmem:[#allocation2 + $0x4] sm:$0xf]
    %v61 = vld [vmem:[#allocation2 + $0x8] sm:$0xf]
    %v62 = vld [vmem:[#allocation2 + $0xc] sm:$0xf]
    %v63 = vld [vmem:[%s2] sm:$0x1]
    %v65 = vlaneseq
    %v66 = vshrl.u32 %v65, 7
    %v67 = vsub.s32 0, %v66
    %v68 = vrot.slane %v63, %v67
    %v74 = vunpack.c.l.b16 %v59
    %v75 = vunpack.c.l.b16 %v60
    %v76 = vunpack.c.l.b16 %v61
    %v77 = vunpack.c.l.b16 %v62
    %v78 = vpack.c.b16 %v75, %v74
    %v79 = vpack.c.b16 %v77, %v76
    %vm82 = vcmask 261120
    %v84 = vsel %vm82, %v58, 0
    %86 = vmatprep.subr.bf16.mxu0 0
    %87 = vmatpush1.bf16.msra.mxu0 %v78
    %88 = vmatprep.subr.bf16.mxu0 0
    %89 = vmatpush1.bf16.msra.mxu0 %v79
    %90 = vmatprep.subr.bf16.mxu0 0
    %91 = vmatpush1.bf16.msra.mxu0 0
    %92 = vmatprep.subr.bf16.mxu0 0
    %93 = vmatpush1.bf16.msra.mxu0 0
    %94 = vmatprep.subr.bf16.mxu0 0
    %95 = vmatpush1.bf16.msra.mxu0 0
    %96 = vmatprep.subr.bf16.mxu0 0
    %97 = vmatpush1.bf16.msra.mxu0 0
    %98 = vmatprep.subr.bf16.mxu0 0
    %99 = vmatpush1.bf16.msra.mxu0 0
    %100 = vmatprep.subr.bf16.mxu0 0
    %101 = vmatpush1.bf16.msra.mxu0 0
    %102 = vmatprep.subr.bf16.mxu0 0
    %103 = vmatpush1.bf16.msra.mxu0 0
    %104 = vmatprep.subr.bf16.mxu0 0
    %105 = vmatpush1.bf16.msra.mxu0 0
    %106 = vmatprep.subr.bf16.mxu0 0
    %107 = vmatpush1.bf16.msra.mxu0 0
    %108 = vmatprep.subr.bf16.mxu0 0
    %109 = vmatpush1.bf16.msra.mxu0 0
    %110 = vmatprep.subr.bf16.mxu0 0
    %111 = vmatpush1.bf16.msra.mxu0 0
    %112 = vmatprep.subr.bf16.mxu0 0
    %113 = vmatpush1.bf16.msra.mxu0 0
    %114 = vmatprep.subr.bf16.mxu0 0
    %115 = vmatpush1.bf16.msra.mxu0 0
    %116 = vmatprep.subr.bf16.mxu0 0
    %117 = vmatpush1.bf16.msra.mxu0 0
    %118 = vmatprep.mubr.bf16.mxu0 0
    %119 = vmatmul.mubr.bf16.gmra.mrb[0].mxu0 %v84
    %v120 = vpop.f32.mrb[0].mxu0
    %v121 = vadd.f32 %v68, %v120
    %v122 = vpop.f32.mrb[0].mxu0
    %v123 = vpop.f32.mrb[0].mxu0
    %v124 = vpop.f32.mrb[0].mxu0
    %125 = vdwg.mxu0
    %v126 = vtanh.pop %v121
    %v127 = vpack.c.bf16 %v126, %v126
    %v128 = vld [vmem:[%s3] sm:$0xf]
    %v129 = vld [vmem:[%s3 + $0x4] sm:$0xf]
    %v130 = vld [vmem:[%s3 + $0x8] sm:$0xf]
    %v131 = vld [vmem:[%s3 + $0xc] sm:$0xf]
    %v132 = vld [vmem:[%s4] sm:$0x1]
    %v134 = vlaneseq
    %v135 = vshrl.u32 %v134, 7
    %v136 = vsub.s32 0, %v135
    %v137 = vrot.slane %v132, %v136
    %v143 = vunpack.c.l.b16 %v128
    %v144 = vunpack.c.l.b16 %v129
    %v145 = vunpack.c.l.b16 %v130
    %v146 = vunpack.c.l.b16 %v131
    %v147 = vpack.c.b16 %v144, %v143
    %v148 = vpack.c.b16 %v146, %v145
    %v152 = vsel %vm82, %v127, 0
    %154 = vmatprep.subr.bf16.mxu0 0
    %155 = vmatpush1.bf16.msra.mxu0 %v147
    %156 = vmatprep.subr.bf16.mxu0 0
    %157 = vmatpush1.bf16.msra.mxu0 %v148
    %158 = vmatprep.subr.bf16.mxu0 0
    %159 = vmatpush1.bf16.msra.mxu0 0
    %160 = vmatprep.subr.bf16.mxu0 0
    %161 = vmatpush1.bf16.msra.mxu0 0
    %162 = vmatprep.subr.bf16.mxu0 0
    %163 = vmatpush1.bf16.msra.mxu0 0
    %164 = vmatprep.subr.bf16.mxu0 0
    %165 = vmatpush1.bf16.msra.mxu0 0
    %166 = vmatprep.subr.bf16.mxu0 0
    %167 = vmatpush1.bf16.msra.mxu0 0
    %168 = vmatprep.subr.bf16.mxu0 0
    %169 = vmatpush1.bf16.msra.mxu0 0
    %170 = vmatprep.subr.bf16.mxu0 0
    %171 = vmatpush1.bf16.msra.mxu0 0
    %172 = vmatprep.subr.bf16.mxu0 0
    %173 = vmatpush1.bf16.msra.mxu0 0
    %174 = vmatprep.subr.bf16.mxu0 0
    %175 = vmatpush1.bf16.msra.mxu0 0
    %176 = vmatprep.subr.bf16.mxu0 0
    %177 = vmatpush1.bf16.msra.mxu0 0
    %178 = vmatprep.subr.bf16.mxu0 0
    %179 = vmatpush1.bf16.msra.mxu0 0
    %180 = vmatprep.subr.bf16.mxu0 0
    %181 = vmatpush1.bf16.msra.mxu0 0
    %182 = vmatprep.subr.bf16.mxu0 0
    %183 = vmatpush1.bf16.msra.mxu0 0
    %184 = vmatprep.subr.bf16.mxu0 0
    %185 = vmatpush1.bf16.msra.mxu0 0
    %186 = vmatprep.mubr.bf16.mxu0 0
    %187 = vmatmul.mubr.bf16.gmra.mrb[0].mxu0 %v152
    %v188 = vpop.f32.mrb[0].mxu0
    %v189 = vadd.f32 %v137, %v188
    %v190 = vpop.f32.mrb[0].mxu0
    %v191 = vpop.f32.mrb[0].mxu0
    %v192 = vpop.f32.mrb[0].mxu0
    %193 = vdwg.mxu0
    %v194 = vtanh.pop %v189
    %v195 = vpack.c.bf16 %v194, %v194
    %v196 = vld [vmem:[#allocation4] sm:$0xff]
    %v197 = vld [vmem:[#allocation4 + $0x8] sm:$0xf]
    %v198 = vld [vmem:[#allocation4 + $0xc] sm:$0xff]
    %v199 = vld [vmem:[#allocation4 + $0x14] sm:$0xf]
    %v200 = vld [vmem:[#allocation4 + $0x18] sm:$0xff]
    %v201 = vld [vmem:[#allocation4 + $0x20] sm:$0xf]
    %v202 = vld [vmem:[#allocation4 + $0x24] sm:$0xff]
    %v203 = vld [vmem:[#allocation4 + $0x2c] sm:$0xf]
    %v204 = vld [vmem:[#allocation4 + $0x30] sm:$0xff]
    %v205 = vld [vmem:[#allocation4 + $0x38] sm:$0xf]
    %v206 = vld [vmem:[#allocation4 + $0x3c] sm:$0xff]
    %v207 = vld [vmem:[#allocation4 + $0x44] sm:$0xf]
    %v208 = vld [vmem:[#allocation4 + $0x48] sm:$0xff]
    %v209 = vld [vmem:[#allocation4 + $0x50] sm:$0xf]
    %v210 = vld [vmem:[#allocation4 + $0x54] sm:$0xff]
    %v211 = vld [vmem:[#allocation4 + $0x5c] sm:$0xf]
    %v212 = vld [vmem:[%s6] sm:$0x7]
    %v214 = vlaneseq
    %v215 = vshrl.u32 %v214, 7
    %v216 = vsub.s32 0, %v215
    %v217 = vrot.slane %v212, %v216
    %v218 = vlaneseq
    %v219 = vshrl.u32 %v218, 7
    %v220 = vsub.s32 1, %v219
    %v221 = vrot.slane %v212, %v220
    %v222 = vlaneseq
    %v223 = vshrl.u32 %v222, 7
    %v224 = vsub.s32 2, %v223
    %v225 = vrot.slane %v212, %v224
    %v245 = vunpack.c.l.b16 %v196
    %v246 = vunpack.c.h.b16 %v196
    %v247 = vunpack.c.l.b16 %v197
    %v248 = vunpack.c.l.b16 %v198
    %v249 = vunpack.c.h.b16 %v198
    %v250 = vunpack.c.l.b16 %v199
    %v251 = vunpack.c.l.b16 %v200
    %v252 = vunpack.c.h.b16 %v200
    %v253 = vunpack.c.l.b16 %v201
    %v254 = vunpack.c.l.b16 %v202
    %v255 = vunpack.c.h.b16 %v202
    %v256 = vunpack.c.l.b16 %v203
    %v257 = vunpack.c.l.b16 %v204
    %v258 = vunpack.c.h.b16 %v204
    %v259 = vunpack.c.l.b16 %v205
    %v260 = vunpack.c.l.b16 %v206
    %v261 = vunpack.c.h.b16 %v206
    %v262 = vunpack.c.l.b16 %v207
    %v263 = vunpack.c.l.b16 %v208
    %v264 = vunpack.c.h.b16 %v208
    %v265 = vunpack.c.l.b16 %v209
    %v266 = vunpack.c.l.b16 %v210
    %v267 = vunpack.c.h.b16 %v210
    %v268 = vunpack.c.l.b16 %v211
    %v269 = vpack.c.b16 %v248, %v245
    %v270 = vpack.c.b16 %v249, %v246
    %v271 = vpack.c.b16 %v250, %v247
    %v272 = vpack.c.b16 %v254, %v251
    %v273 = vpack.c.b16 %v255, %v252
    %v274 = vpack.c.b16 %v256, %v253
    %v275 = vpack.c.b16 %v260, %v257
    %v276 = vpack.c.b16 %v261, %v258
    %v277 = vpack.c.b16 %v262, %v259
    %v278 = vpack.c.b16 %v266, %v263
    %v279 = vpack.c.b16 %v267, %v264
    %v280 = vpack.c.b16 %v268, %v265
    %vm293 = vcmask 523264
    %v295 = vsel %vm293, %v195, 0
    %297 = vmatprep.subr.bf16.mxu0 %v270
    %298 = vmatpush1.bf16.msra.mxu0 %v269
    %299 = vmatprep.subr.bf16.mxu0 %v273
    %300 = vmatpush1.bf16.msra.mxu0 %v272
    %301 = vmatprep.subr.bf16.mxu0 %v276
    %302 = vmatpush1.bf16.msra.mxu0 %v275
    %303 = vmatprep.subr.bf16.mxu0 %v279
    %304 = vmatpush1.bf16.msra.mxu0 %v278
    %305 = vmatprep.subr.bf16.mxu0 0
    %306 = vmatpush1.bf16.msra.mxu0 0
    %307 = vmatprep.subr.bf16.mxu0 0
    %308 = vmatpush1.bf16.msra.mxu0 0
    %309 = vmatprep.subr.bf16.mxu0 0
    %310 = vmatpush1.bf16.msra.mxu0 0
    %311 = vmatprep.subr.bf16.mxu0 0
    %312 = vmatpush1.bf16.msra.mxu0 0
    %313 = vmatprep.subr.bf16.mxu0 0
    %314 = vmatpush1.bf16.msra.mxu0 0
    %315 = vmatprep.subr.bf16.mxu0 0
    %316 = vmatpush1.bf16.msra.mxu0 0
    %317 = vmatprep.subr.bf16.mxu0 0
    %318 = vmatpush1.bf16.msra.mxu0 0
    %319 = vmatprep.subr.bf16.mxu0 0
    %320 = vmatpush1.bf16.msra.mxu0 0
    %321 = vmatprep.subr.bf16.mxu0 0
    %322 = vmatpush1.bf16.msra.mxu0 0
    %323 = vmatprep.subr.bf16.mxu0 0
    %324 = vmatpush1.bf16.msra.mxu0 0
    %325 = vmatprep.subr.bf16.mxu0 0
    %326 = vmatpush1.bf16.msra.mxu0 0
    %327 = vmatprep.subr.bf16.mxu0 0
    %328 = vmatpush1.bf16.msra.mxu0 0
    %329 = vmatprep.mubr.bf16.mxu0 0
    %330 = vmatmul.mubr.bf16.gmra.mrb[0].mxu0 %v295
    %v331 = vpop.f32.mrb[0].mxu0
    %v332 = vadd.f32 %v217, %v331
    %v333 = vpop.f32.mrb[0].mxu0
    %v334 = vadd.f32 %v221, %v333
    %v335 = vpop.f32.mrb[0].mxu0
    %v336 = vpop.f32.mrb[0].mxu0
    %337 = vdwg.mxu0
    %338 = vmatprep.subr.bf16.mxu0 0
    %339 = vmatpush1.bf16.msra.mxu0 %v271
    %340 = vmatprep.subr.bf16.mxu0 0
    %341 = vmatpush1.bf16.msra.mxu0 %v274
    %342 = vmatprep.subr.bf16.mxu0 0
    %343 = vmatpush1.bf16.msra.mxu0 %v277
    %344 = vmatprep.subr.bf16.mxu0 0
    %345 = vmatpush1.bf16.msra.mxu0 %v280
    %346 = vmatprep.subr.bf16.mxu0 0
    %347 = vmatpush1.bf16.msra.mxu0 0
    %348 = vmatprep.subr.bf16.mxu0 0
    %349 = vmatpush1.bf16.msra.mxu0 0
    %350 = vmatprep.subr.bf16.mxu0 0
    %351 = vmatpush1.bf16.msra.mxu0 0
    %352 = vmatprep.subr.bf16.mxu0 0
    %353 = vmatpush1.bf16.msra.mxu0 0
    %354 = vmatprep.subr.bf16.mxu0 0
    %355 = vmatpush1.bf16.msra.mxu0 0
    %356 = vmatprep.subr.bf16.mxu0 0
    %357 = vmatpush1.bf16.msra.mxu0 0
    %358 = vmatprep.subr.bf16.mxu0 0
    %359 = vmatpush1.bf16.msra.mxu0 0
    %360 = vmatprep.subr.bf16.mxu0 0
    %361 = vmatpush1.bf16.msra.mxu0 0
    %362 = vmatprep.subr.bf16.mxu0 0
    %363 = vmatpush1.bf16.msra.mxu0 0
    %364 = vmatprep.subr.bf16.mxu0 0
    %365 = vmatpush1.bf16.msra.mxu0 0
    %366 = vmatprep.subr.bf16.mxu0 0
    %367 = vmatpush1.bf16.msra.mxu0 0
    %368 = vmatprep.subr.bf16.mxu0 0
    %369 = vmatpush1.bf16.msra.mxu0 0
    %370 = vmatprep.mubr.bf16.mxu0 0
    %371 = vmatmul.mubr.bf16.gmra.mrb[0].mxu0 %v295
    %v372 = vpop.f32.mrb[0].mxu0
    %v373 = vadd.f32 %v225, %v372
    %v374 = vpop.f32.mrb[0].mxu0
    %v375 = vpop.f32.mrb[0].mxu0
    %v376 = vpop.f32.mrb[0].mxu0
    %377 = vdwg.mxu0
    %379 = vrot.lane.b32.xlu0 %v332, 64
    %v380 = vpop.permute.xlu0 %379
    %383 = vrot.lane.b32.xlu0 %v334, 64
    %v384 = vpop.permute.xlu0 %383
    %v386 = vcombine.low %v332, %v334
    %v387 = vcombine.high %v332, %v334
    %v389 = vunpack.c.l.s4 1983009808
    %v390 = vunpack.c.0.s8 %v389
    %v391 = vlaneseq
    %v392 = vshrl.u32 %v391, 7
    %v393 = vsub.s32 %v390, %v392
    %v394 = vrot.slane %v386, %v393
    %v396 = vunpack.c.l.s4 1983009808
    %v397 = vunpack.c.0.s8 %v396
    %v398 = vlaneseq
    %v399 = vshrl.u32 %v398, 7
    %v400 = vsub.s32 %v397, %v399
    %v401 = vrot.slane %v387, %v400
    %v402 = vcombine.low %v380, %v384
    %v403 = vcombine.high %v380, %v384
    %v405 = vunpack.c.l.s4 1983009808
    %v406 = vunpack.c.0.s8 %v405
    %v407 = vlaneseq
    %v408 = vshrl.u32 %v407, 7
    %v409 = vsub.s32 %v406, %v408
    %v410 = vrot.slane %v402, %v409
    %v412 = vunpack.c.l.s4 1983009808
    %v413 = vunpack.c.0.s8 %v412
    %v414 = vlaneseq
    %v415 = vshrl.u32 %v414, 7
    %v416 = vsub.s32 %v413, %v415
    %v417 = vrot.slane %v403, %v416
    %v418 = vcombine.low %v394, %v410
    %v419 = vcombine.high %v394, %v410
    %v421 = vunpack.c.l.s4 1934713408
    %v422 = vunpack.c.0.s8 %v421
    %v423 = vlaneseq
    %v424 = vshrl.u32 %v423, 7
    %v425 = vsub.s32 %v422, %v424
    %v426 = vrot.slane %v418, %v425
    %v428 = vunpack.c.l.s4 1934713408
    %v429 = vunpack.c.0.s8 %v428
    %v430 = vlaneseq
    %v431 = vshrl.u32 %v430, 7
    %v432 = vsub.s32 %v429, %v431
    %v433 = vrot.slane %v419, %v432
    %v434 = vcombine.low %v401, %v417
    %v435 = vcombine.high %v401, %v417
    %v437 = vunpack.c.l.s4 1934713408
    %v438 = vunpack.c.0.s8 %v437
    %v439 = vlaneseq
    %v440 = vshrl.u32 %v439, 7
    %v441 = vsub.s32 %v438, %v440
    %v442 = vrot.slane %v434, %v441
    %v444 = vunpack.c.l.s4 1934713408
    %v445 = vunpack.c.0.s8 %v444
    %v446 = vlaneseq
    %v447 = vshrl.u32 %v446, 7
    %v448 = vsub.s32 %v445, %v447
    %v449 = vrot.slane %v435, %v448
    %v450 = vcombine.high %v426, 0.0
    %v451 = vcombine.high %v433, 0.0
    %v452 = vcombine.high %v442, 0.0
    %v453 = vcombine.high %v449, 0.0
    %vm454 = vcmask 519168
    %v455 = vsel %vm454, %v426, -inf
    %v456 = vrot.slane %v455, 4
    %v457 = vmax.f32 %v455, %v456
    %v458 = vrot.slane %v457, 2
    %v459 = vmax.f32 %v457, %v458
    %v460 = vrot.slane %v459, 1
    %v461 = vmax.f32 %v459, %v460
    %v462 = vsel %vm454, %v450, -inf
    %v463 = vrot.slane %v462, 4
    %v464 = vmax.f32 %v462, %v463
    %v465 = vrot.slane %v464, 2
    %v466 = vmax.f32 %v464, %v465
    %v467 = vrot.slane %v466, 1
    %v468 = vmax.f32 %v466, %v467
    %v469 = vsel %vm454, %v433, -inf
    %v470 = vrot.slane %v469, 4
    %v471 = vmax.f32 %v469, %v470
    %v472 = vrot.slane %v471, 2
    %v473 = vmax.f32 %v471, %v472
    %v474 = vrot.slane %v473, 1
    %v475 = vmax.f32 %v473, %v474
    %v476 = vsel %vm454, %v451, -inf
    %v477 = vrot.slane %v476, 4
    %v478 = vmax.f32 %v476, %v477
    %v479 = vrot.slane %v478, 2
    %v480 = vmax.f32 %v478, %v479
    %v481 = vrot.slane %v480, 1
    %v482 = vmax.f32 %v480, %v481
    %v483 = vsel %vm454, %v442, -inf
    %v484 = vrot.slane %v483, 4
    %v485 = vmax.f32 %v483, %v484
    %v486 = vrot.slane %v485, 2
    %v487 = vmax.f32 %v485, %v486
    %v488 = vrot.slane %v487, 1
    %v489 = vmax.f32 %v487, %v488
    %v490 = vsel %vm454, %v452, -inf
    %v491 = vrot.slane %v490, 4
    %v492 = vmax.f32 %v490, %v491
    %v493 = vrot.slane %v492, 2
    %v494 = vmax.f32 %v492, %v493
    %v495 = vrot.slane %v494, 1
    %v496 = vmax.f32 %v494, %v495
    %v497 = vsel %vm454, %v449, -inf
    %v498 = vrot.slane %v497, 4
    %v499 = vmax.f32 %v497, %v498
    %v500 = vrot.slane %v499, 2
    %v501 = vmax.f32 %v499, %v500
    %v502 = vrot.slane %v501, 1
    %v503 = vmax.f32 %v501, %v502
    %v504 = vsel %vm454, %v453, -inf
    %v505 = vrot.slane %v504, 4
    %v506 = vmax.f32 %v504, %v505
    %v507 = vrot.slane %v506, 2
    %v508 = vmax.f32 %v506, %v507
    %v509 = vrot.slane %v508, 1
    %v510 = vmax.f32 %v508, %v509
    %v511 = vsub.f32 %v426, %v461
    %v512 = vsub.f32 %v450, %v468
    %v513 = vsub.f32 %v433, %v475
    %v514 = vsub.f32 %v451, %v482
    %v515 = vsub.f32 %v442, %v489
    %v516 = vsub.f32 %v452, %v496
    %v517 = vsub.f32 %v449, %v503
    %v518 = vsub.f32 %v453, %v510
    %v519 = vmul.f32 %v511, 1.442695
    %v520 = vpow.pop %v519
    %v521 = vmul.f32 %v512, 1.442695
    %v522 = vpow.pop %v521
    %v523 = vmul.f32 %v513, 1.442695
    %v524 = vpow.pop %v523
    %v525 = vmul.f32 %v514, 1.442695
    %v526 = vpow.pop %v525
    %v527 = vmul.f32 %v515, 1.442695
    %v528 = vpow.pop %v527
    %v529 = vmul.f32 %v516, 1.442695
    %v530 = vpow.pop %v529
    %v531 = vmul.f32 %v517, 1.442695
    %v532 = vpow.pop %v531
    %v533 = vmul.f32 %v518, 1.442695
    %v534 = vpow.pop %v533
    %v535 = vsel %vm454, %v520, 0.0
    %v536 = vrot.slane %v535, 4
    %v537 = vadd.f32 %v535, %v536
    %v538 = vrot.slane %v537, 2
    %v539 = vadd.f32 %v537, %v538
    %v540 = vrot.slane %v539, 1
    %v541 = vadd.f32 %v539, %v540
    %v542 = vsel %vm454, %v522, 0.0
    %v543 = vrot.slane %v542, 4
    %v544 = vadd.f32 %v542, %v543
    %v545 = vrot.slane %v544, 2
    %v546 = vadd.f32 %v544, %v545
    %v547 = vrot.slane %v546, 1
    %v548 = vadd.f32 %v546, %v547
    %v549 = vsel %vm454, %v524, 0.0
    %v550 = vrot.slane %v549, 4
    %v551 = vadd.f32 %v549, %v550
    %v552 = vrot.slane %v551, 2
    %v553 = vadd.f32 %v551, %v552
    %v554 = vrot.slane %v553, 1
    %v555 = vadd.f32 %v553, %v554
    %v556 = vsel %vm454, %v526, 0.0
    %v557 = vrot.slane %v556, 4
    %v558 = vadd.f32 %v556, %v557
    %v559 = vrot.slane %v558, 2
    %v560 = vadd.f32 %v558, %v559
    %v561 = vrot.slane %v560, 1
    %v562 = vadd.f32 %v560, %v561
    %v563 = vsel %vm454, %v528, 0.0
    %v564 = vrot.slane %v563, 4
    %v565 = vadd.f32 %v563, %v564
    %v566 = vrot.slane %v565, 2
    %v567 = vadd.f32 %v565, %v566
    %v568 = vrot.slane %v567, 1
    %v569 = vadd.f32 %v567, %v568
    %v570 = vsel %vm454, %v530, 0.0
    %v571 = vrot.slane %v570, 4
    %v572 = vadd.f32 %v570, %v571
    %v573 = vrot.slane %v572, 2
    %v574 = vadd.f32 %v572, %v573
    %v575 = vrot.slane %v574, 1
    %v576 = vadd.f32 %v574, %v575
    %v577 = vsel %vm454, %v532, 0.0
    %v578 = vrot.slane %v577, 4
    %v579 = vadd.f32 %v577, %v578
    %v580 = vrot.slane %v579, 2
    %v581 = vadd.f32 %v579, %v580
    %v582 = vrot.slane %v581, 1
    %v583 = vadd.f32 %v581, %v582
    %v584 = vsel %vm454, %v534, 0.0
    %v585 = vrot.slane %v584, 4
    %v586 = vadd.f32 %v584, %v585
    %v587 = vrot.slane %v586, 2
    %v588 = vadd.f32 %v586, %v587
    %v589 = vrot.slane %v588, 1
    %v590 = vadd.f32 %v588, %v589
    %v591 = vrcp.pop %v541
    %v592 = vrcp.pop %v548
    %v593 = vrcp.pop %v555
    %v594 = vrcp.pop %v562
    %v595 = vrcp.pop %v569
    %v596 = vrcp.pop %v576
    %v597 = vrcp.pop %v583
    %v598 = vrcp.pop %v590
    %v599 = vmul.f32 %v520, %v591
    %v600 = vmul.f32 %v522, %v592
    %v601 = vmul.f32 %v524, %v593
    %v602 = vmul.f32 %v526, %v594
    %v603 = vmul.f32 %v528, %v595
    %v604 = vmul.f32 %v530, %v596
    %v605 = vmul.f32 %v532, %v597
    %v606 = vmul.f32 %v534, %v598
    %v607 = vcombine.low %v599, %v601
    %v609 = vunpack.c.l.s4 1983009808
    %v610 = vunpack.c.0.s8 %v609
    %v611 = vlaneseq
    %v612 = vshrl.u32 %v611, 7
    %v613 = vsub.s32 %v610, %v612
    %v614 = vrot.slane %v607, %v613
    %v615 = vcombine.low %v600, %v602
    %v617 = vunpack.c.l.s4 1983009808
    %v618 = vunpack.c.0.s8 %v617
    %v619 = vlaneseq
    %v620 = vshrl.u32 %v619, 7
    %v621 = vsub.s32 %v618, %v620
    %v622 = vrot.slane %v615, %v621
    %v623 = vcombine.low %v603, %v605
    %v625 = vunpack.c.l.s4 1983009808
    %v626 = vunpack.c.0.s8 %v625
    %v627 = vlaneseq
    %v628 = vshrl.u32 %v627, 7
    %v629 = vsub.s32 %v626, %v628
    %v630 = vrot.slane %v623, %v629
    %v631 = vcombine.low %v604, %v606
    %v633 = vunpack.c.l.s4 1983009808
    %v634 = vunpack.c.0.s8 %v633
    %v635 = vlaneseq
    %v636 = vshrl.u32 %v635, 7
    %v637 = vsub.s32 %v634, %v636
    %v638 = vrot.slane %v631, %v637
    %v639 = vcombine.low %v614, %v622
    %v640 = vcombine.high %v614, %v622
    %v642 = vunpack.c.l.s4 1934713408
    %v643 = vunpack.c.0.s8 %v642
    %v644 = vlaneseq
    %v645 = vshrl.u32 %v644, 7
    %v646 = vsub.s32 %v643, %v645
    %v647 = vrot.slane %v639, %v646
    %v649 = vunpack.c.l.s4 1934713408
    %v650 = vunpack.c.0.s8 %v649
    %v651 = vlaneseq
    %v652 = vshrl.u32 %v651, 7
    %v653 = vsub.s32 %v650, %v652
    %v654 = vrot.slane %v640, %v653
    %v655 = vcombine.low %v630, %v638
    %v656 = vcombine.high %v630, %v638
    %v658 = vunpack.c.l.s4 1934713408
    %v659 = vunpack.c.0.s8 %v658
    %v660 = vlaneseq
    %v661 = vshrl.u32 %v660, 7
    %v662 = vsub.s32 %v659, %v661
    %v663 = vrot.slane %v655, %v662
    %v665 = vunpack.c.l.s4 1934713408
    %v666 = vunpack.c.0.s8 %v665
    %v667 = vlaneseq
    %v668 = vshrl.u32 %v667, 7
    %v669 = vsub.s32 %v666, %v668
    %v670 = vrot.slane %v656, %v669
    %v671 = vcombine.low %v647, %v663
    %v672 = vcombine.high %v647, %v663
    %v673 = vcombine.low %v654, %v670
    %v674 = vcombine.high %v654, %v670
    %676 = vrot.lane.b32.xlu0 %v672, 64
    %v677 = vpop.permute.xlu0 %676
    %680 = vrot.lane.b32.xlu0 %v674, 64
    %v681 = vpop.permute.xlu0 %680
    %v683 = vsel %vm293, %v671, %v677
    %v684 = vsel %vm293, %v673, %v681
    %685 = vst [vmem:[%s7] sm:$0xff] %v683
    %686 = vst [vmem:[%s7 + $0x8] sm:$0xff] %v684
    %688 = vrot.lane.b32.xlu0 %v373, 124
    %v689 = vpop.permute.xlu0 %688
    %691 = vrot.lane.b32.xlu0 %v373, 120
    %v692 = vpop.permute.xlu0 %691
    %694 = vrot.lane.b32.xlu0 %v373, 116
    %v695 = vpop.permute.xlu0 %694
    %697 = vrot.lane.b32.xlu0 %v373, 112
    %v698 = vpop.permute.xlu0 %697
    %700 = vrot.lane.b32.xlu0 %v373, 108
    %v701 = vpop.permute.xlu0 %700
    %703 = vrot.lane.b32.xlu0 %v373, 104
    %v704 = vpop.permute.xlu0 %703
    %706 = vrot.lane.b32.xlu0 %v373, 100
    %v707 = vpop.permute.xlu0 %706
    %v709 = vcombine.low %v373, %v692
    %v710 = vcombine.high %v373, %v692
    %v712 = vunpack.c.l.s4 1983009808
    %v713 = vunpack.c.0.s8 %v712
    %v714 = vlaneseq
    %v715 = vshrl.u32 %v714, 7
    %v716 = vsub.s32 %v713, %v715
    %v717 = vrot.slane %v709, %v716
    %v719 = vunpack.c.l.s4 1983009808
    %v720 = vunpack.c.0.s8 %v719
    %v721 = vlaneseq
    %v722 = vshrl.u32 %v721, 7
    %v723 = vsub.s32 %v720, %v722
    %v724 = vrot.slane %v710, %v723
    %v725 = vcombine.low %v689, %v695
    %v726 = vcombine.high %v689, %v695
    %v728 = vunpack.c.l.s4 1983009808
    %v729 = vunpack.c.0.s8 %v728
    %v730 = vlaneseq
    %v731 = vshrl.u32 %v730, 7
    %v732 = vsub.s32 %v729, %v731
    %v733 = vrot.slane %v725, %v732
    %v735 = vunpack.c.l.s4 1983009808
    %v736 = vunpack.c.0.s8 %v735
    %v737 = vlaneseq
    %v738 = vshrl.u32 %v737, 7
    %v739 = vsub.s32 %v736, %v738
    %v740 = vrot.slane %v726, %v739
    %v741 = vcombine.low %v698, %v704
    %v742 = vcombine.high %v698, %v704
    %v744 = vunpack.c.l.s4 1983009808
    %v745 = vunpack.c.0.s8 %v744
    %v746 = vlaneseq
    %v747 = vshrl.u32 %v746, 7
    %v748 = vsub.s32 %v745, %v747
    %v749 = vrot.slane %v741, %v748
    %v751 = vunpack.c.l.s4 1983009808
    %v752 = vunpack.c.0.s8 %v751
    %v753 = vlaneseq
    %v754 = vshrl.u32 %v753, 7
    %v755 = vsub.s32 %v752, %v754
    %v756 = vrot.slane %v742, %v755
    %v757 = vcombine.low %v701, %v707
    %v758 = vcombine.high %v701, %v707
    %v760 = vunpack.c.l.s4 1983009808
    %v761 = vunpack.c.0.s8 %v760
    %v762 = vlaneseq
    %v763 = vshrl.u32 %v762, 7
    %v764 = vsub.s32 %v761, %v763
    %v765 = vrot.slane %v757, %v764
    %v767 = vunpack.c.l.s4 1983009808
    %v768 = vunpack.c.0.s8 %v767
    %v769 = vlaneseq
    %v770 = vshrl.u32 %v769, 7
    %v771 = vsub.s32 %v768, %v770
    %v772 = vrot.slane %v758, %v771
    %v773 = vcombine.low %v717, %v733
    %v774 = vcombine.high %v717, %v733
    %v776 = vunpack.c.l.s4 1934713408
    %v777 = vunpack.c.0.s8 %v776
    %v778 = vlaneseq
    %v779 = vshrl.u32 %v778, 7
    %v780 = vsub.s32 %v777, %v779
    %v781 = vrot.slane %v773, %v780
    %v783 = vunpack.c.l.s4 1934713408
    %v784 = vunpack.c.0.s8 %v783
    %v785 = vlaneseq
    %v786 = vshrl.u32 %v785, 7
    %v787 = vsub.s32 %v784, %v786
    %v788 = vrot.slane %v774, %v787
    %v789 = vcombine.low %v724, %v740
    %v790 = vcombine.high %v724, %v740
    %v792 = vunpack.c.l.s4 1934713408
    %v793 = vunpack.c.0.s8 %v792
    %v794 = vlaneseq
    %v795 = vshrl.u32 %v794, 7
    %v796 = vsub.s32 %v793, %v795
    %v797 = vrot.slane %v789, %v796
    %v799 = vunpack.c.l.s4 1934713408
    %v800 = vunpack.c.0.s8 %v799
    %v801 = vlaneseq
    %v802 = vshrl.u32 %v801, 7
    %v803 = vsub.s32 %v800, %v802
    %v804 = vrot.slane %v790, %v803
    %v805 = vcombine.low %v749, %v765
    %v806 = vcombine.high %v749, %v765
    %v808 = vunpack.c.l.s4 1934713408
    %v809 = vunpack.c.0.s8 %v808
    %v810 = vlaneseq
    %v811 = vshrl.u32 %v810, 7
    %v812 = vsub.s32 %v809, %v811
    %v813 = vrot.slane %v805, %v812
    %v815 = vunpack.c.l.s4 1934713408
    %v816 = vunpack.c.0.s8 %v815
    %v817 = vlaneseq
    %v818 = vshrl.u32 %v817, 7
    %v819 = vsub.s32 %v816, %v818
    %v820 = vrot.slane %v806, %v819
    %v821 = vcombine.low %v756, %v772
    %v822 = vcombine.high %v756, %v772
    %v824 = vunpack.c.l.s4 1934713408
    %v825 = vunpack.c.0.s8 %v824
    %v826 = vlaneseq
    %v827 = vshrl.u32 %v826, 7
    %v828 = vsub.s32 %v825, %v827
    %v829 = vrot.slane %v821, %v828
    %v831 = vunpack.c.l.s4 1934713408
    %v832 = vunpack.c.0.s8 %v831
    %v833 = vlaneseq
    %v834 = vshrl.u32 %v833, 7
    %v835 = vsub.s32 %v832, %v834
    %v836 = vrot.slane %v822, %v835
    %v837 = vcombine.low %v781, %v813
    %v838 = vcombine.high %v781, %v813
    %v839 = vcombine.low %v788, %v820
    %v840 = vcombine.high %v788, %v820
    %v841 = vcombine.low %v797, %v829
    %v842 = vcombine.high %v797, %v829
    %v843 = vcombine.low %v804, %v836
    %v844 = vcombine.high %v804, %v836
    %vm845 = vcmask 31744
    %v846 = vsel %vm845, %v837, -inf
    %847 = vmax.xlane.f32.xlu0 %v846
    %v848 = vpop.xlane.xlu0 %847
    %v849 = vsel %vm845, %v838, -inf
    %850 = vmax.xlane.f32.xlu0 %v849
    %v851 = vpop.xlane.xlu0 %850
    %v852 = vsel %vm845, %v839, -inf
    %853 = vmax.xlane.f32.xlu0 %v852
    %v854 = vpop.xlane.xlu0 %853
    %v855 = vsel %vm845, %v840, -inf
    %856 = vmax.xlane.f32.xlu0 %v855
    %v857 = vpop.xlane.xlu0 %856
    %v858 = vsel %vm845, %v841, -inf
    %859 = vmax.xlane.f32.xlu0 %v858
    %v860 = vpop.xlane.xlu0 %859
    %v861 = vsel %vm845, %v842, -inf
    %862 = vmax.xlane.f32.xlu0 %v861
    %v863 = vpop.xlane.xlu0 %862
    %v864 = vsel %vm845, %v843, -inf
    %865 = vmax.xlane.f32.xlu0 %v864
    %v866 = vpop.xlane.xlu0 %865
    %v867 = vsel %vm845, %v844, -inf
    %868 = vmax.xlane.f32.xlu0 %v867
    %v869 = vpop.xlane.xlu0 %868
    %v870 = vsub.f32 %v837, %v848
    %v871 = vsub.f32 %v838, %v851
    %v872 = vsub.f32 %v839, %v854
    %v873 = vsub.f32 %v840, %v857
    %v874 = vsub.f32 %v841, %v860
    %v875 = vsub.f32 %v842, %v863
    %v876 = vsub.f32 %v843, %v866
    %v877 = vsub.f32 %v844, %v869
    %v878 = vmul.f32 %v870, 1.442695
    %v879 = vpow.pop %v878
    %v880 = vmul.f32 %v871, 1.442695
    %v881 = vpow.pop %v880
    %v882 = vmul.f32 %v872, 1.442695
    %v883 = vpow.pop %v882
    %v884 = vmul.f32 %v873, 1.442695
    %v885 = vpow.pop %v884
    %v886 = vmul.f32 %v874, 1.442695
    %v887 = vpow.pop %v886
    %v888 = vmul.f32 %v875, 1.442695
    %v889 = vpow.pop %v888
    %v890 = vmul.f32 %v876, 1.442695
    %v891 = vpow.pop %v890
    %v892 = vmul.f32 %v877, 1.442695
    %v893 = vpow.pop %v892
    %v894 = vsel %vm845, %v879, 0.0
    %895 = vadd.xlane.f32.xlu0 %v894
    %v896 = vpop.xlane.xlu0 %895
    %v897 = vsel %vm845, %v881, 0.0
    %898 = vadd.xlane.f32.xlu0 %v897
    %v899 = vpop.xlane.xlu0 %898
    %v900 = vsel %vm845, %v883, 0.0
    %901 = vadd.xlane.f32.xlu0 %v900
    %v902 = vpop.xlane.xlu0 %901
    %v903 = vsel %vm845, %v885, 0.0
    %904 = vadd.xlane.f32.xlu0 %v903
    %v905 = vpop.xlane.xlu0 %904
    %v906 = vsel %vm845, %v887, 0.0
    %907 = vadd.xlane.f32.xlu0 %v906
    %v908 = vpop.xlane.xlu0 %907
    %v909 = vsel %vm845, %v889, 0.0
    %910 = vadd.xlane.f32.xlu0 %v909
    %v911 = vpop.xlane.xlu0 %910
    %v912 = vsel %vm845, %v891, 0.0
    %913 = vadd.xlane.f32.xlu0 %v912
    %v914 = vpop.xlane.xlu0 %913
    %v915 = vsel %vm845, %v893, 0.0
    %916 = vadd.xlane.f32.xlu0 %v915
    %v917 = vpop.xlane.xlu0 %916
    %v918 = vrcp.pop %v896
    %v919 = vrcp.pop %v899
    %v920 = vrcp.pop %v902
    %v921 = vrcp.pop %v905
    %v922 = vrcp.pop %v908
    %v923 = vrcp.pop %v911
    %v924 = vrcp.pop %v914
    %v925 = vrcp.pop %v917
    %v926 = vmul.f32 %v879, %v918
    %v927 = vmul.f32 %v881, %v919
    %v928 = vmul.f32 %v883, %v920
    %v929 = vmul.f32 %v885, %v921
    %v930 = vmul.f32 %v887, %v922
    %v931 = vmul.f32 %v889, %v923
    %v932 = vmul.f32 %v891, %v924
    %v933 = vmul.f32 %v893, %v925
    %v934 = vcombine.low %v926, %v928
    %v935 = vcombine.high %v926, %v928
    %v937 = vunpack.c.l.s4 1983009808
    %v938 = vunpack.c.0.s8 %v937
    %v939 = vlaneseq
    %v940 = vshrl.u32 %v939, 7
    %v941 = vsub.s32 %v938, %v940
    %v942 = vrot.slane %v934, %v941
    %v944 = vunpack.c.l.s4 1983009808
    %v945 = vunpack.c.0.s8 %v944
    %v946 = vlaneseq
    %v947 = vshrl.u32 %v946, 7
    %v948 = vsub.s32 %v945, %v947
    %v949 = vrot.slane %v935, %v948
    %v950 = vcombine.low %v927, %v929
    %v951 = vcombine.high %v927, %v929
    %v953 = vunpack.c.l.s4 1983009808
    %v954 = vunpack.c.0.s8 %v953
    %v955 = vlaneseq
    %v956 = vshrl.u32 %v955, 7
    %v957 = vsub.s32 %v954, %v956
    %v958 = vrot.slane %v950, %v957
    %v960 = vunpack.c.l.s4 1983009808
    %v961 = vunpack.c.0.s8 %v960
    %v962 = vlaneseq
    %v963 = vshrl.u32 %v962, 7
    %v964 = vsub.s32 %v961, %v963
    %v965 = vrot.slane %v951, %v964
    %v966 = vcombine.low %v930, %v932
    %v967 = vcombine.high %v930, %v932
    %v969 = vunpack.c.l.s4 1983009808
    %v970 = vunpack.c.0.s8 %v969
    %v971 = vlaneseq
    %v972 = vshrl.u32 %v971, 7
    %v973 = vsub.s32 %v970, %v972
    %v974 = vrot.slane %v966, %v973
    %v976 = vunpack.c.l.s4 1983009808
    %v977 = vunpack.c.0.s8 %v976
    %v978 = vlaneseq
    %v979 = vshrl.u32 %v978, 7
    %v980 = vsub.s32 %v977, %v979
    %v981 = vrot.slane %v967, %v980
    %v982 = vcombine.low %v931, %v933
    %v983 = vcombine.high %v931, %v933
    %v985 = vunpack.c.l.s4 1983009808
    %v986 = vunpack.c.0.s8 %v985
    %v987 = vlaneseq
    %v988 = vshrl.u32 %v987, 7
    %v989 = vsub.s32 %v986, %v988
    %v990 = vrot.slane %v982, %v989
    %v992 = vunpack.c.l.s4 1983009808
    %v993 = vunpack.c.0.s8 %v992
    %v994 = vlaneseq
    %v995 = vshrl.u32 %v994, 7
    %v996 = vsub.s32 %v993, %v995
    %v997 = vrot.slane %v983, %v996
    %v998 = vcombine.low %v942, %v958
    %v999 = vcombine.high %v942, %v958
    %v1001 = vunpack.c.l.s4 1934713408
    %v1002 = vunpack.c.0.s8 %v1001
    %v1003 = vlaneseq
    %v1004 = vshrl.u32 %v1003, 7
    %v1005 = vsub.s32 %v1002, %v1004
    %v1006 = vrot.slane %v998, %v1005
    %v1008 = vunpack.c.l.s4 1934713408
    %v1009 = vunpack.c.0.s8 %v1008
    %v1010 = vlaneseq
    %v1011 = vshrl.u32 %v1010, 7
    %v1012 = vsub.s32 %v1009, %v1011
    %v1013 = vrot.slane %v999, %v1012
    %v1014 = vcombine.low %v949, %v965
    %v1015 = vcombine.high %v949, %v965
    %v1017 = vunpack.c.l.s4 1934713408
    %v1018 = vunpack.c.0.s8 %v1017
    %v1019 = vlaneseq
    %v1020 = vshrl.u32 %v1019, 7
    %v1021 = vsub.s32 %v1018, %v1020
    %v1022 = vrot.slane %v1014, %v1021
    %v1024 = vunpack.c.l.s4 1934713408
    %v1025 = vunpack.c.0.s8 %v1024
    %v1026 = vlaneseq
    %v1027 = vshrl.u32 %v1026, 7
    %v1028 = vsub.s32 %v1025, %v1027
    %v1029 = vrot.slane %v1015, %v1028
    %v1030 = vcombine.low %v974, %v990
    %v1031 = vcombine.high %v974, %v990
    %v1033 = vunpack.c.l.s4 1934713408
    %v1034 = vunpack.c.0.s8 %v1033
    %v1035 = vlaneseq
    %v1036 = vshrl.u32 %v1035, 7
    %v1037 = vsub.s32 %v1034, %v1036
    %v1038 = vrot.slane %v1030, %v1037
    %v1040 = vunpack.c.l.s4 1934713408
    %v1041 = vunpack.c.0.s8 %v1040
    %v1042 = vlaneseq
    %v1043 = vshrl.u32 %v1042, 7
    %v1044 = vsub.s32 %v1041, %v1043
    %v1045 = vrot.slane %v1031, %v1044
    %v1046 = vcombine.low %v981, %v997
    %v1047 = vcombine.high %v981, %v997
    %v1049 = vunpack.c.l.s4 1934713408
    %v1050 = vunpack.c.0.s8 %v1049
    %v1051 = vlaneseq
    %v1052 = vshrl.u32 %v1051, 7
    %v1053 = vsub.s32 %v1050, %v1052
    %v1054 = vrot.slane %v1046, %v1053
    %v1056 = vunpack.c.l.s4 1934713408
    %v1057 = vunpack.c.0.s8 %v1056
    %v1058 = vlaneseq
    %v1059 = vshrl.u32 %v1058, 7
    %v1060 = vsub.s32 %v1057, %v1059
    %v1061 = vrot.slane %v1047, %v1060
    %v1062 = vcombine.low %v1006, %v1038
    %v1063 = vcombine.high %v1006, %v1038
    %v1064 = vcombine.low %v1013, %v1045
    %v1065 = vcombine.high %v1013, %v1045
    %v1066 = vcombine.low %v1022, %v1054
    %v1067 = vcombine.high %v1022, %v1054
    %v1068 = vcombine.low %v1029, %v1061
    %v1069 = vcombine.high %v1029, %v1061
    %1071 = vrot.lane.b32.xlu0 %v1063, 4
    %v1072 = vpop.permute.xlu0 %1071
    %1075 = vrot.lane.b32.xlu0 %v1064, 8
    %v1076 = vpop.permute.xlu0 %1075
    %1079 = vrot.lane.b32.xlu0 %v1065, 12
    %v1080 = vpop.permute.xlu0 %1079
    %1083 = vrot.lane.b32.xlu0 %v1066, 16
    %v1084 = vpop.permute.xlu0 %1083
    %1087 = vrot.lane.b32.xlu0 %v1067, 20
    %v1088 = vpop.permute.xlu0 %1087
    %1091 = vrot.lane.b32.xlu0 %v1068, 24
    %v1092 = vpop.permute.xlu0 %1091
    %1095 = vrot.lane.b32.xlu0 %v1069, 28
    %v1096 = vpop.permute.xlu0 %1095
    %v1098 = vsel %vm845, %v1062, %v1072
    %vm1099 = vcmask 64512
    %v1100 = vsel %vm1099, %v1098, %v1076
    %vm1101 = vcmask 97280
    %v1102 = vsel %vm1101, %v1100, %v1080
    %vm1103 = vcmask 130048
    %v1104 = vsel %vm1103, %v1102, %v1084
    %vm1105 = vcmask 162816
    %v1106 = vsel %vm1105, %v1104, %v1088
    %vm1107 = vcmask 195584
    %v1108 = vsel %vm1107, %v1106, %v1092
    %vm1109 = vcmask 228352
    %v1110 = vsel %vm1109, %v1108, %v1096
    %1111 = vst.msk [vmem:[%s8] sm:$0xff] %vm82, %v1110
    // Predicated region
    $region38: #{graph_generator_forward.1} parent=1 // pred_check
      _
    $region39: #{graph_generator_forward.1} parent=1 // pred_check_branch
      %1113 = sbr.rel (0) target = $region41
    $region40: #{graph_generator_forward.1} parent=1 // pred_region
      _
    $region41: #{graph_generator_forward.1} parent=1 // pred_fallthru
      _
    // Predicated region
    $region42: #{graph_generator_forward.1} parent=1 // pred_check
      _
    $region43: #{graph_generator_forward.1} parent=1 // pred_check_branch
      %1115 = sbr.rel (0) target = $region45
    $region44: #{graph_generator_forward.1} parent=1 // pred_region
      _
    $region45: #{graph_generator_forward.1} parent=1 // pred_fallthru
      _
    // Predicated region
    $region46: #{graph_generator_forward.1} parent=1 // pred_check
      _
    $region47: #{graph_generator_forward.1} parent=1 // pred_check_branch
      %1117 = sbr.rel (0) target = $region49
    $region48: #{graph_generator_forward.1} parent=1 // pred_region
      _
    $region49: #{graph_generator_forward.1} parent=1 // pred_fallthru
      _
    // Predicated region
    $region50: #{graph_generator_forward.1} parent=1 // pred_check
      _
    $region51: #{graph_generator_forward.1} parent=1 // pred_check_branch
      %1119 = sbr.rel (0) target = $region53
    $region52: #{graph_generator_forward.1} parent=1 // pred_region
      _
    $region53: #{graph_generator_forward.1} parent=1 // pred_fallthru
      _
    %1120 = vsyncpa [#allocation3], 1
    %1121 = vsyncpa [#allocation5], 1

</llo_original>
